<compile_context>
chip_gen: v7x
topology: tpu7x:2x2x1
jax: 0.10.0
libtpu: 0.0.40
codegen_flags: <defaults>
</compile_context>

<pallas_src>
import functools

import jax
import jax.numpy as jnp
from jax.experimental import pallas as pl
from jax.experimental.pallas import tpu as pltpu

EPS = 1e-5
# Matmul operand dtype.  f32 keeps the toy-size self-check tight; switch to
# jnp.bfloat16 on v6e/v7x at realistic channel counts (BN stays f32).
MATMUL_DTYPE = jnp.float32


# --------------------------- kernel ------------------------------------------

def _channel_totals(v, cout):
    """v: (1, W*cout) per-lane column sums.  Returns (1, W*cout) where every
    lane holds its channel's total (reduced over the W lane-groups AND
    broadcast back) using log2(W) lane rotations on the XLU."""
    wcols = v.shape[-1]
    k = cout
    while k < wcols:
        v = v + pltpu.roll(v, shift=k, axis=1)
        k *= 2
    return v


def _bn_scale_shift(acc, gamma_row, beta_row, cout, n_per_channel):
    """Training-mode BN (biased variance) folded to one per-lane scale/shift."""
    s = _channel_totals(jnp.sum(acc, axis=0, keepdims=True), cout)
    ss = _channel_totals(jnp.sum(acc * acc, axis=0, keepdims=True), cout)
    inv_n = 1.0 / n_per_channel
    mean = s * inv_n
    var = jnp.maximum(ss * inv_n - mean * mean, 0.0)     # biased variance
    scale = gamma_row * jax.lax.rsqrt(var + EPS)
    shift = beta_row - mean * scale
    return scale, shift


def residual_block_kernel(x_ref, w1_ref, w2_ref, pc_ref, out_ref, *, img_h, cout):
    """Fused relu(bn2(conv2(relu(bn1(conv1(x))))) + shortcut_1x1(x)).

    x_ref  : (N*H, W*Cin)        lane-dense input slab
    w1_ref : (W*Cin, 4*W*Cout)   banded [conv1 dy=0 | dy=1 | dy=2 | shortcut]
    w2_ref : (W*Cout, 3*W*Cout)  banded [conv2 dy=0 | dy=1 | dy=2]
    pc_ref : (5, W*Cout)         lane-tiled gamma1, beta1, gamma2, beta2, b_sc
    out_ref: (N*H, W*Cout)       lane-dense output slab
    """
    rows, wcout = out_ref.shape
    w_img = wcout // cout
    n_per_channel = float(rows * w_img)                  # = N*H*W

    # image-boundary masks for the dy = +-1 row shifts
    row = jax.lax.broadcasted_iota(jnp.int32, (rows, 1), 0)
    y = row % img_h
    not_top = y != 0
    not_bot = y != (img_h - 1)

    def band_sum(t, lo):
        """Combine the three dy column-blocks of a banded-matmul result:
        out[r] = t_dy0[r-1] + t_dy1[r] + t_dy2[r+1], zeroed at image borders
        (row shift + mask; no H padding, no scratch buffer)."""
        t_up = t[:, lo:lo + wcout]
        t_mid = t[:, lo + wcout:lo + 2 * wcout]
        t_dn = t[:, lo + 2 * wcout:lo + 3 * wcout]
        z = jnp.zeros((1, wcout), jnp.float32)
        up = jnp.where(not_top, jnp.concatenate([z, t_up[:-1]], axis=0), 0.0)
        dn = jnp.where(not_bot, jnp.concatenate([t_dn[1:], z], axis=0), 0.0)
        return t_mid + up + dn

    x = x_ref[...].astype(MATMUL_DTYPE)

    # ---- stage 1: conv1 (3 dy bands) + fused 1x1 shortcut in ONE matmul ----
    t1 = jnp.dot(x, w1_ref[...].astype(MATMUL_DTYPE),
                 preferred_element_type=jnp.float32)     # (rows, 4*W*Cout)
    acc1 = band_sum(t1, 0)
    shortcut = t1[:, 3 * wcout:4 * wcout] + pc_ref[4:5, :]

    scale1, shift1 = _bn_scale_shift(acc1, pc_ref[0:1, :], pc_ref[1:2, :],
                                     cout, n_per_channel)
    h1 = jnp.maximum(acc1 * scale1 + shift1, 0.0)        # (rows, W*Cout)

    # ---- stage 2: conv2 (3 dy bands) in one matmul -------------------------
    t2 = jnp.dot(h1.astype(MATMUL_DTYPE), w2_ref[...].astype(MATMUL_DTYPE),
                 preferred_element_type=jnp.float32)     # (rows, 3*W*Cout)
    acc2 = band_sum(t2, 0)
    scale2, shift2 = _bn_scale_shift(acc2, pc_ref[2:3, :], pc_ref[3:4, :],
                                     cout, n_per_channel)

    out_ref[...] = jnp.maximum(acc2 * scale2 + shift2 + shortcut, 0.0)


# ------------------------------ wrapper --------------------------------------

def _banded_weights(w_hwio, W):
    """3x3 HWIO conv weights -> 3 banded (W*Ci, W*Co) matrices (one per dy).
    SAME padding in W is encoded by the band structure (missing taps = 0)."""
    bands = []
    for dy in range(3):
        b = 0
        for dx in range(3):
            shift = jnp.eye(W, k=1 - dx, dtype=jnp.float32)   # x_in = x + dx - 1
            b = b + jnp.kron(shift, w_hwio[dy, dx])
        bands.append(b)
    return bands


def residual_block_forward(x_nchw, params):
    (w1, b1, g1, be1, w2, b2, g2, be2, ws, bs) = params
    N, Cin, H, W = x_nchw.shape
    Cout = w1.shape[-1]
    if W & (W - 1):
        raise NotImplementedError("roll-based BN reduce needs power-of-two W")

    # NCHW -> lane-dense (N*H, W*Cin) slab (no spatial padding needed at all)
    x = jnp.transpose(x_nchw, (0, 2, 3, 1)).astype(jnp.float32)
    x_slab = x.reshape(N * H, W * Cin)

    # conv1 bands + fused shortcut block: (W*Cin, 4*W*Cout)
    b1w = _banded_weights(w1.astype(jnp.float32), W)
    sc_band = jnp.kron(jnp.eye(W, dtype=jnp.float32), ws.astype(jnp.float32))
    w1_packed = jnp.concatenate(b1w + [sc_band], axis=1)

    # conv2 bands: (W*Cout, 3*W*Cout)
    w2_packed = jnp.concatenate(_banded_weights(w2.astype(jnp.float32), W), axis=1)

    # per-channel vectors lane-tiled to (5, W*Cout); conv biases b1/b2 dropped
    # (exactly cancelled by training-mode BN's batch-mean subtraction)
    pc = jnp.stack([g1, be1, g2, be2, bs]).astype(jnp.float32)   # (5, Cout)
    pc_tiled = jnp.tile(pc, (1, W))                              # (5, W*Cout)

    rows = N * H
    flops = 2 * rows * (W * Cin) * (4 * W * Cout) + 2 * rows * (W * Cout) * (3 * W * Cout)
    bytes_accessed = 4 * (x_slab.size + w1_packed.size + w2_packed.size
                          + pc_tiled.size + rows * W * Cout)
    cost = pl.CostEstimate(flops=int(flops), transcendentals=2 * W * Cout,
                           bytes_accessed=int(bytes_accessed))

    kernel = functools.partial(residual_block_kernel, img_h=H, cout=Cout)
    vmem = lambda: pl.BlockSpec(memory_space=pltpu.MemorySpace.VMEM)
    out2d = pl.pallas_call(
        kernel,
        out_shape=jax.ShapeDtypeStruct((rows, W * Cout), jnp.float32),
        in_specs=[vmem(), vmem(), vmem(), vmem()],
        out_specs=vmem(),
        cost_estimate=cost,
    )(x_slab, w1_packed, w2_packed, pc_tiled)
    # TODO(synk): at realistic ResNet sizes add a grid over row tiles
    # (dimension_semantics=("parallel", ...) to use both v7x TensorCores, tiles
    # sized for 64 MiB VMEM with vmem_limit_bytes set) and restructure BN into
    # cross-tile sum / sum-of-squares accumulation finalized under pl.when.

    out = out2d.reshape(N, H, W, Cout)
    return jnp.transpose(out, (0, 3, 1, 2))                     # -> NCHW


# ------------------------ params & reference ---------------------------------

def init_params(key, cin, cout):
    ks = jax.random.split(key, 8)
    w1 = jax.random.normal(ks[0], (3, 3, cin, cout), jnp.float32) * 0.1
    b1 = jax.random.normal(ks[1], (cout,), jnp.float32) * 0.05
    g1 = 1.0 + 0.1 * jax.random.normal(ks[2], (cout,), jnp.float32)
    be1 = 0.1 * jax.random.normal(ks[3], (cout,), jnp.float32)
    w2 = jax.random.normal(ks[4], (3, 3, cout, cout), jnp.float32) * 0.1
    b2 = jax.random.normal(ks[5], (cout,), jnp.float32) * 0.05
    g2 = 1.0 + 0.1 * jax.random.normal(ks[6], (cout,), jnp.float32)
    be2 = 0.1 * jax.random.normal(ks[7], (cout,), jnp.float32)
    if cin != cout:
        kws, kbs = jax.random.split(ks[0])
        ws = jax.random.normal(kws, (cin, cout), jnp.float32) * 0.1
        bs = jax.random.normal(kbs, (cout,), jnp.float32) * 0.05
    else:  # identity shortcut expressed as identity 1x1 conv
        ws = jnp.eye(cin, dtype=jnp.float32)
        bs = jnp.zeros((cout,), jnp.float32)
    return (w1, b1, g1, be1, w2, b2, g2, be2, ws, bs)


def ref_forward(x_nchw, params):
    (w1, b1, g1, be1, w2, b2, g2, be2, ws, bs) = params
    x = jnp.transpose(x_nchw, (0, 2, 3, 1))

    def conv3(z, w, b):
        return jax.lax.conv_general_dilated(
            z, w, (1, 1), "SAME",
            dimension_numbers=("NHWC", "HWIO", "NHWC")) + b

    def bn(z, g, beta):
        m = jnp.mean(z, axis=(0, 1, 2))
        v = jnp.mean((z - m) ** 2, axis=(0, 1, 2))
        return (z - m) * jax.lax.rsqrt(v + EPS) * g + beta

    h = jax.nn.relu(bn(conv3(x, w1, b1), g1, be1))
    o = bn(conv3(h, w2, b2), g2, be2)
    sc = jnp.einsum("nhwi,io->nhwo", x, ws) + bs
    return jnp.transpose(jax.nn.relu(o + sc), (0, 3, 1, 2))


# -------------------------------- main ----------------------------------------

if __name__ == "__main__":
    key = jax.random.PRNGKey(0)
    kx, kp = jax.random.split(key)
    N, Cin, Cout, H, W = 2, 4, 8, 16, 16
    x = jax.random.normal(kx, (N, Cin, H, W), jnp.float32)
    params = init_params(kp, Cin, Cout)

    out = jax.jit(residual_block_forward)(x, params)
    out = jax.block_until_ready(out)
    assert out.shape == (N, Cout, H, W)

    ref = ref_forward(x, params)
    err = float(jnp.max(jnp.abs(out - ref)))
    if err > 1e-3:
        raise AssertionError(f"kernel/reference mismatch: max abs err {err}")

    print("KERNEL_OK")
</pallas_src>

<mosaic_0001>
module attributes {stable_mosaic.version = 11 : i64} {
  func.func @residual_block_kernel(%arg0: memref<32x64xf32, #tpu.memory_space<vmem>>, %arg1: memref<64x512xf32, #tpu.memory_space<vmem>>, %arg2: memref<128x384xf32, #tpu.memory_space<vmem>>, %arg3: memref<5x128xf32, #tpu.memory_space<vmem>>, %arg4: memref<32x128xf32, #tpu.memory_space<vmem>>) attributes {dimension_semantics = [], scalar_prefetch = 0 : i64, scratch_operands = 0 : i64, tpu.core_type = #tpu.core_type<tc>} {
    %0 = tpu.iota {dimensions = array<i32: 0>} : vector<32x1xi32>
    %c16_i32 = arith.constant 16 : i32
    %c0_i32 = arith.constant 0 : i32
    %1 = arith.cmpi eq, %c16_i32, %c0_i32 : i32
    %c1_i32 = arith.constant 1 : i32
    %2 = arith.select %1, %c1_i32, %c16_i32 : i32
    %3 = vector.broadcast %2 : i32 to vector<32x1xi32>
    %4 = arith.remsi %0, %3 : vector<32x1xi32>
    %c0_i32_0 = arith.constant 0 : i32
    %5 = vector.broadcast %c0_i32_0 : i32 to vector<32x1xi32>
    %6 = arith.cmpi ne, %4, %5 : vector<32x1xi32>
    %c0_i32_1 = arith.constant 0 : i32
    %7 = vector.broadcast %c0_i32_1 : i32 to vector<32x1xi32>
    %8 = arith.cmpi slt, %4, %7 : vector<32x1xi32>
    %c0_i32_2 = arith.constant 0 : i32
    %9 = arith.cmpi slt, %2, %c0_i32_2 : i32
    %10 = vector.broadcast %9 : i1 to vector<32x1xi1>
    %11 = vector.broadcast %10 : vector<32x1xi1> to vector<32x1xi1>
    %12 = arith.xori %8, %11 : vector<32x1xi1>
    %13 = arith.andi %12, %6 : vector<32x1xi1>
    %14 = vector.broadcast %2 : i32 to vector<32x1xi32>
    %15 = arith.addi %4, %14 : vector<32x1xi32>
    %16 = arith.select %13, %15, %4 : vector<32x1xi1>, vector<32x1xi32>
    %c0_i32_3 = arith.constant 0 : i32
    %17 = vector.broadcast %c0_i32_3 : i32 to vector<32x1xi32>
    %18 = arith.cmpi ne, %16, %17 : vector<32x1xi32>
    %c15_i32 = arith.constant 15 : i32
    %19 = vector.broadcast %c15_i32 : i32 to vector<32x1xi32>
    %20 = arith.cmpi ne, %16, %19 : vector<32x1xi32>
    %c0 = arith.constant 0 : index
    %c0_4 = arith.constant 0 : index
    %21 = vector.load %arg0[%c0, %c0_4] : memref<32x64xf32, #tpu.memory_space<vmem>>, vector<32x64xf32>
    %c0_5 = arith.constant 0 : index
    %c0_6 = arith.constant 0 : index
    %22 = vector.load %arg1[%c0_5, %c0_6] : memref<64x512xf32, #tpu.memory_space<vmem>>, vector<64x512xf32>
    %cst = arith.constant dense<0.000000e+00> : vector<32x512xf32>
    %23 = tpu.matmul %21, %22, %cst {dimension_numbers = #tpu.dot_dimension_numbers<[1], [0], [0], [1], [0, 0, 1, 1], [], []>} : vector<32x64xf32>, vector<64x512xf32>, vector<32x512xf32> -> vector<32x512xf32>
    %24 = vector.extract_strided_slice %23 {offsets = [0, 0], sizes = [32, 128], strides = [1, 1]} : vector<32x512xf32> to vector<32x128xf32>
    %25 = vector.extract_strided_slice %23 {offsets = [0, 128], sizes = [32, 128], strides = [1, 1]} : vector<32x512xf32> to vector<32x128xf32>
    %26 = vector.extract_strided_slice %23 {offsets = [0, 256], sizes = [32, 128], strides = [1, 1]} : vector<32x512xf32> to vector<32x128xf32>
    %cst_7 = arith.constant 0.000000e+00 : f32
    %27 = vector.broadcast %cst_7 : f32 to vector<1x128xf32>
    %28 = vector.extract_strided_slice %24 {offsets = [0, 0], sizes = [31, 128], strides = [1, 1]} : vector<32x128xf32> to vector<31x128xf32>
    %29 = tpu.concatenate %27, %28 in 0 : vector<1x128xf32>, vector<31x128xf32> -> vector<32x128xf32>
    %cst_8 = arith.constant 0.000000e+00 : f32
    %30 = vector.shape_cast %18 : vector<32x1xi1> to vector<32x1xi1>
    %31 = vector.broadcast %30 : vector<32x1xi1> to vector<32x128xi1>
    %32 = vector.broadcast %cst_8 : f32 to vector<32x128xf32>
    %33 = arith.select %31, %29, %32 : vector<32x128xi1>, vector<32x128xf32>
    %34 = vector.extract_strided_slice %26 {offsets = [1, 0], sizes = [31, 128], strides = [1, 1]} : vector<32x128xf32> to vector<31x128xf32>
    %35 = tpu.concatenate %34, %27 in 0 : vector<31x128xf32>, vector<1x128xf32> -> vector<32x128xf32>
    %cst_9 = arith.constant 0.000000e+00 : f32
    %36 = vector.shape_cast %20 : vector<32x1xi1> to vector<32x1xi1>
    %37 = vector.broadcast %36 : vector<32x1xi1> to vector<32x128xi1>
    %38 = vector.broadcast %cst_9 : f32 to vector<32x128xf32>
    %39 = arith.select %37, %35, %38 : vector<32x128xi1>, vector<32x128xf32>
    %40 = arith.addf %25, %33 : vector<32x128xf32>
    %41 = arith.addf %40, %39 : vector<32x128xf32>
    %42 = vector.extract_strided_slice %23 {offsets = [0, 384], sizes = [32, 128], strides = [1, 1]} : vector<32x512xf32> to vector<32x128xf32>
    %c4 = arith.constant 4 : index
    %c0_10 = arith.constant 0 : index
    %43 = vector.load %arg3[%c4, %c0_10] : memref<5x128xf32, #tpu.memory_space<vmem>>, vector<1x128xf32>
    %44 = vector.broadcast %43 : vector<1x128xf32> to vector<32x128xf32>
    %45 = arith.addf %42, %44 : vector<32x128xf32>
    %c0_11 = arith.constant 0 : index
    %c0_12 = arith.constant 0 : index
    %46 = vector.load %arg3[%c0_11, %c0_12] : memref<5x128xf32, #tpu.memory_space<vmem>>, vector<1x128xf32>
    %c1 = arith.constant 1 : index
    %c0_13 = arith.constant 0 : index
    %47 = vector.load %arg3[%c1, %c0_13] : memref<5x128xf32, #tpu.memory_space<vmem>>, vector<1x128xf32>
    %cst_14 = arith.constant dense<0.000000e+00> : vector<128xf32>
    %48 = vector.multi_reduction <add>, %41, %cst_14 [0] : vector<32x128xf32> to vector<128xf32>
    %49 = vector.shape_cast %48 : vector<128xf32> to vector<1x128xf32>
    %c8_i32 = arith.constant 8 : i32
    %50 = tpu.dynamic_rotate %49 by %c8_i32 dim 1 : vector<1x128xf32>, i32 -> vector<1x128xf32>
    %51 = arith.addf %49, %50 : vector<1x128xf32>
    %c16_i32_15 = arith.constant 16 : i32
    %52 = tpu.dynamic_rotate %51 by %c16_i32_15 dim 1 : vector<1x128xf32>, i32 -> vector<1x128xf32>
    %53 = arith.addf %51, %52 : vector<1x128xf32>
    %c32_i32 = arith.constant 32 : i32
    %54 = tpu.dynamic_rotate %53 by %c32_i32 dim 1 : vector<1x128xf32>, i32 -> vector<1x128xf32>
    %55 = arith.addf %53, %54 : vector<1x128xf32>
    %c64_i32 = arith.constant 64 : i32
    %56 = tpu.dynamic_rotate %55 by %c64_i32 dim 1 : vector<1x128xf32>, i32 -> vector<1x128xf32>
    %57 = arith.addf %55, %56 : vector<1x128xf32>
    %58 = arith.mulf %41, %41 : vector<32x128xf32>
    %cst_16 = arith.constant dense<0.000000e+00> : vector<128xf32>
    %59 = vector.multi_reduction <add>, %58, %cst_16 [0] : vector<32x128xf32> to vector<128xf32>
    %60 = vector.shape_cast %59 : vector<128xf32> to vector<1x128xf32>
    %c8_i32_17 = arith.constant 8 : i32
    %61 = tpu.dynamic_rotate %60 by %c8_i32_17 dim 1 : vector<1x128xf32>, i32 -> vector<1x128xf32>
    %62 = arith.addf %60, %61 : vector<1x128xf32>
    %c16_i32_18 = arith.constant 16 : i32
    %63 = tpu.dynamic_rotate %62 by %c16_i32_18 dim 1 : vector<1x128xf32>, i32 -> vector<1x128xf32>
    %64 = arith.addf %62, %63 : vector<1x128xf32>
    %c32_i32_19 = arith.constant 32 : i32
    %65 = tpu.dynamic_rotate %64 by %c32_i32_19 dim 1 : vector<1x128xf32>, i32 -> vector<1x128xf32>
    %66 = arith.addf %64, %65 : vector<1x128xf32>
    %c64_i32_20 = arith.constant 64 : i32
    %67 = tpu.dynamic_rotate %66 by %c64_i32_20 dim 1 : vector<1x128xf32>, i32 -> vector<1x128xf32>
    %68 = arith.addf %66, %67 : vector<1x128xf32>
    %cst_21 = arith.constant 0.001953125 : f32
    %69 = vector.broadcast %cst_21 : f32 to vector<1x128xf32>
    %70 = arith.mulf %57, %69 : vector<1x128xf32>
    %cst_22 = arith.constant 0.001953125 : f32
    %71 = vector.broadcast %cst_22 : f32 to vector<1x128xf32>
    %72 = arith.mulf %68, %71 : vector<1x128xf32>
    %73 = arith.mulf %70, %70 : vector<1x128xf32>
    %74 = arith.subf %72, %73 : vector<1x128xf32>
    %cst_23 = arith.constant 0.000000e+00 : f32
    %75 = vector.broadcast %cst_23 : f32 to vector<1x128xf32>
    %76 = arith.maximumf %74, %75 : vector<1x128xf32>
    %cst_24 = arith.constant 9.99999974E-6 : f32
    %77 = vector.broadcast %cst_24 : f32 to vector<1x128xf32>
    %78 = arith.addf %76, %77 : vector<1x128xf32>
    %79 = math.rsqrt %78 : vector<1x128xf32>
    %80 = arith.mulf %46, %79 : vector<1x128xf32>
    %81 = arith.mulf %70, %80 : vector<1x128xf32>
    %82 = arith.subf %47, %81 : vector<1x128xf32>
    %83 = vector.broadcast %80 : vector<1x128xf32> to vector<32x128xf32>
    %84 = arith.mulf %41, %83 : vector<32x128xf32>
    %85 = vector.broadcast %82 : vector<1x128xf32> to vector<32x128xf32>
    %86 = arith.addf %84, %85 : vector<32x128xf32>
    %cst_25 = arith.constant 0.000000e+00 : f32
    %87 = vector.broadcast %cst_25 : f32 to vector<32x128xf32>
    %88 = arith.maximumf %86, %87 : vector<32x128xf32>
    %c0_26 = arith.constant 0 : index
    %c0_27 = arith.constant 0 : index
    %89 = vector.load %arg2[%c0_26, %c0_27] : memref<128x384xf32, #tpu.memory_space<vmem>>, vector<128x384xf32>
    %cst_28 = arith.constant dense<0.000000e+00> : vector<32x384xf32>
    %90 = tpu.matmul %88, %89, %cst_28 {dimension_numbers = #tpu.dot_dimension_numbers<[1], [0], [0], [1], [0, 0, 1, 1], [], []>} : vector<32x128xf32>, vector<128x384xf32>, vector<32x384xf32> -> vector<32x384xf32>
    %91 = vector.extract_strided_slice %90 {offsets = [0, 0], sizes = [32, 128], strides = [1, 1]} : vector<32x384xf32> to vector<32x128xf32>
    %92 = vector.extract_strided_slice %90 {offsets = [0, 128], sizes = [32, 128], strides = [1, 1]} : vector<32x384xf32> to vector<32x128xf32>
    %93 = vector.extract_strided_slice %90 {offsets = [0, 256], sizes = [32, 128], strides = [1, 1]} : vector<32x384xf32> to vector<32x128xf32>
    %cst_29 = arith.constant 0.000000e+00 : f32
    %94 = vector.broadcast %cst_29 : f32 to vector<1x128xf32>
    %95 = vector.extract_strided_slice %91 {offsets = [0, 0], sizes = [31, 128], strides = [1, 1]} : vector<32x128xf32> to vector<31x128xf32>
    %96 = tpu.concatenate %94, %95 in 0 : vector<1x128xf32>, vector<31x128xf32> -> vector<32x128xf32>
    %cst_30 = arith.constant 0.000000e+00 : f32
    %97 = vector.shape_cast %18 : vector<32x1xi1> to vector<32x1xi1>
    %98 = vector.broadcast %97 : vector<32x1xi1> to vector<32x128xi1>
    %99 = vector.broadcast %cst_30 : f32 to vector<32x128xf32>
    %100 = arith.select %98, %96, %99 : vector<32x128xi1>, vector<32x128xf32>
    %101 = vector.extract_strided_slice %93 {offsets = [1, 0], sizes = [31, 128], strides = [1, 1]} : vector<32x128xf32> to vector<31x128xf32>
    %102 = tpu.concatenate %101, %94 in 0 : vector<31x128xf32>, vector<1x128xf32> -> vector<32x128xf32>
    %cst_31 = arith.constant 0.000000e+00 : f32
    %103 = vector.shape_cast %20 : vector<32x1xi1> to vector<32x1xi1>
    %104 = vector.broadcast %103 : vector<32x1xi1> to vector<32x128xi1>
    %105 = vector.broadcast %cst_31 : f32 to vector<32x128xf32>
    %106 = arith.select %104, %102, %105 : vector<32x128xi1>, vector<32x128xf32>
    %107 = arith.addf %92, %100 : vector<32x128xf32>
    %108 = arith.addf %107, %106 : vector<32x128xf32>
    %c2 = arith.constant 2 : index
    %c0_32 = arith.constant 0 : index
    %109 = vector.load %arg3[%c2, %c0_32] : memref<5x128xf32, #tpu.memory_space<vmem>>, vector<1x128xf32>
    %c3 = arith.constant 3 : index
    %c0_33 = arith.constant 0 : index
    %110 = vector.load %arg3[%c3, %c0_33] : memref<5x128xf32, #tpu.memory_space<vmem>>, vector<1x128xf32>
    %cst_34 = arith.constant dense<0.000000e+00> : vector<128xf32>
    %111 = vector.multi_reduction <add>, %108, %cst_34 [0] : vector<32x128xf32> to vector<128xf32>
    %112 = vector.shape_cast %111 : vector<128xf32> to vector<1x128xf32>
    %c8_i32_35 = arith.constant 8 : i32
    %113 = tpu.dynamic_rotate %112 by %c8_i32_35 dim 1 : vector<1x128xf32>, i32 -> vector<1x128xf32>
    %114 = arith.addf %112, %113 : vector<1x128xf32>
    %c16_i32_36 = arith.constant 16 : i32
    %115 = tpu.dynamic_rotate %114 by %c16_i32_36 dim 1 : vector<1x128xf32>, i32 -> vector<1x128xf32>
    %116 = arith.addf %114, %115 : vector<1x128xf32>
    %c32_i32_37 = arith.constant 32 : i32
    %117 = tpu.dynamic_rotate %116 by %c32_i32_37 dim 1 : vector<1x128xf32>, i32 -> vector<1x128xf32>
    %118 = arith.addf %116, %117 : vector<1x128xf32>
    %c64_i32_38 = arith.constant 64 : i32
    %119 = tpu.dynamic_rotate %118 by %c64_i32_38 dim 1 : vector<1x128xf32>, i32 -> vector<1x128xf32>
    %120 = arith.addf %118, %119 : vector<1x128xf32>
    %121 = arith.mulf %108, %108 : vector<32x128xf32>
    %cst_39 = arith.constant dense<0.000000e+00> : vector<128xf32>
    %122 = vector.multi_reduction <add>, %121, %cst_39 [0] : vector<32x128xf32> to vector<128xf32>
    %123 = vector.shape_cast %122 : vector<128xf32> to vector<1x128xf32>
    %c8_i32_40 = arith.constant 8 : i32
    %124 = tpu.dynamic_rotate %123 by %c8_i32_40 dim 1 : vector<1x128xf32>, i32 -> vector<1x128xf32>
    %125 = arith.addf %123, %124 : vector<1x128xf32>
    %c16_i32_41 = arith.constant 16 : i32
    %126 = tpu.dynamic_rotate %125 by %c16_i32_41 dim 1 : vector<1x128xf32>, i32 -> vector<1x128xf32>
    %127 = arith.addf %125, %126 : vector<1x128xf32>
    %c32_i32_42 = arith.constant 32 : i32
    %128 = tpu.dynamic_rotate %127 by %c32_i32_42 dim 1 : vector<1x128xf32>, i32 -> vector<1x128xf32>
    %129 = arith.addf %127, %128 : vector<1x128xf32>
    %c64_i32_43 = arith.constant 64 : i32
    %130 = tpu.dynamic_rotate %129 by %c64_i32_43 dim 1 : vector<1x128xf32>, i32 -> vector<1x128xf32>
    %131 = arith.addf %129, %130 : vector<1x128xf32>
    %cst_44 = arith.constant 0.001953125 : f32
    %132 = vector.broadcast %cst_44 : f32 to vector<1x128xf32>
    %133 = arith.mulf %120, %132 : vector<1x128xf32>
    %cst_45 = arith.constant 0.001953125 : f32
    %134 = vector.broadcast %cst_45 : f32 to vector<1x128xf32>
    %135 = arith.mulf %131, %134 : vector<1x128xf32>
    %136 = arith.mulf %133, %133 : vector<1x128xf32>
    %137 = arith.subf %135, %136 : vector<1x128xf32>
    %cst_46 = arith.constant 0.000000e+00 : f32
    %138 = vector.broadcast %cst_46 : f32 to vector<1x128xf32>
    %139 = arith.maximumf %137, %138 : vector<1x128xf32>
    %cst_47 = arith.constant 9.99999974E-6 : f32
    %140 = vector.broadcast %cst_47 : f32 to vector<1x128xf32>
    %141 = arith.addf %139, %140 : vector<1x128xf32>
    %142 = math.rsqrt %141 : vector<1x128xf32>
    %143 = arith.mulf %109, %142 : vector<1x128xf32>
    %144 = arith.mulf %133, %143 : vector<1x128xf32>
    %145 = arith.subf %110, %144 : vector<1x128xf32>
    %146 = vector.broadcast %143 : vector<1x128xf32> to vector<32x128xf32>
    %147 = arith.mulf %108, %146 : vector<32x128xf32>
    %148 = vector.broadcast %145 : vector<1x128xf32> to vector<32x128xf32>
    %149 = arith.addf %147, %148 : vector<32x128xf32>
    %150 = arith.addf %149, %45 : vector<32x128xf32>
    %cst_48 = arith.constant 0.000000e+00 : f32
    %151 = vector.broadcast %cst_48 : f32 to vector<32x128xf32>
    %152 = arith.maximumf %150, %151 : vector<32x128xf32>
    %c0_49 = arith.constant 0 : index
    %c0_50 = arith.constant 0 : index
    %153 = vector.load %arg4[%c0_49, %c0_50] : memref<32x128xf32, #tpu.memory_space<vmem>>, vector<32x128xf32>
    tpu.vector_store %arg4[%c0_49, %c0_50], %152 {strides = array<i32>} : memref<32x128xf32, #tpu.memory_space<vmem>>, vector<32x128xf32>,
    return
  }
}

</mosaic_0001>

<llo_original>
// kernel: tile.9
$region0: #{tile.9}
  %s0 = inlined_call_operand.vmem [shape: f32[5,16,8], index: 0, kind: input, shape index: {}]
  %s1 = inlined_call_operand.vmem [shape: f32[5,128], index: 1, kind: output, shape index: {}]
  %s2 = smov 3
  %v3 = vld [vmem:[%s0] ss:$16 sm:%s2]
  %s4 = smov 12
  %v5 = vld [vmem:[%s0] ss:$16 sm:%s4]
  %vm6 = vcmask 1043458
  %v7 = vsel %vm6, %v5, %v3
  %s8 = scalar_lea.vmem %s0, 60
  %v9 = vld [vmem:[%s8] sm:$0x10]
  %vm10 = vcmask 1044484
  %v11 = vsel %vm10, %v9, %v7
  %vm12 = vcmask 64512
  %13 = vst.msk [vmem:[%s1] sm:$0x1f] %vm12, %v11
  %s14 = scalar_lea.vmem %s0, 15
  %s15 = smov 3
  %v16 = vld [vmem:[%s14] ss:$16 sm:%s15]
  %s17 = scalar_lea.vmem %s0, 15
  %s18 = smov 12
  %v19 = vld [vmem:[%s17] ss:$16 sm:%s18]
  %vm20 = vcmask 1043458
  %v21 = vsel %vm20, %v19, %v16
  %s22 = scalar_lea.vmem %s0, 75
  %v23 = vld [vmem:[%s22] sm:$0x10]
  %vm24 = vcmask 1044484
  %v25 = vsel %vm24, %v23, %v21
  %26 = vrot.lane.b32.xlu0 %v25, 120
  %v27 = vpop.permute.xlu0 %26
  %vm28 = vcmask 1048512
  %29 = vst.msk [vmem:[%s1] sm:$0x1f] %vm28, %v27
  %s30 = scalar_lea.vmem %s0, 14
  %s31 = smov 3
  %v32 = vld [vmem:[%s30] ss:$16 sm:%s31]
  %s33 = scalar_lea.vmem %s0, 14
  %s34 = smov 12
  %v35 = vld [vmem:[%s33] ss:$16 sm:%s34]
  %vm36 = vcmask 1043458
  %v37 = vsel %vm36, %v35, %v32
  %s38 = scalar_lea.vmem %s0, 74
  %v39 = vld [vmem:[%s38] sm:$0x10]
  %vm40 = vcmask 1044484
  %v41 = vsel %vm40, %v39, %v37
  %42 = vrot.lane.b32.xlu0 %v41, 112
  %v43 = vpop.permute.xlu0 %42
  %vm44 = vcmask 982912
  %45 = vst.msk [vmem:[%s1] sm:$0x1f] %vm44, %v43
  %s46 = scalar_lea.vmem %s0, 13
  %s47 = smov 3
  %v48 = vld [vmem:[%s46] ss:$16 sm:%s47]
  %s49 = scalar_lea.vmem %s0, 13
  %s50 = smov 12
  %v51 = vld [vmem:[%s49] ss:$16 sm:%s50]
  %vm52 = vcmask 1043458
  %v53 = vsel %vm52, %v51, %v48
  %s54 = scalar_lea.vmem %s0, 73
  %v55 = vld [vmem:[%s54] sm:$0x10]
  %vm56 = vcmask 1044484
  %v57 = vsel %vm56, %v55, %v53
  %58 = vrot.lane.b32.xlu0 %v57, 104
  %v59 = vpop.permute.xlu0 %58
  %vm60 = vcmask 917312
  %61 = vst.msk [vmem:[%s1] sm:$0x1f] %vm60, %v59
  %s62 = scalar_lea.vmem %s0, 12
  %s63 = smov 3
  %v64 = vld [vmem:[%s62] ss:$16 sm:%s63]
  %s65 = scalar_lea.vmem %s0, 12
  %s66 = smov 12
  %v67 = vld [vmem:[%s65] ss:$16 sm:%s66]
  %vm68 = vcmask 1043458
  %v69 = vsel %vm68, %v67, %v64
  %s70 = scalar_lea.vmem %s0, 72
  %v71 = vld [vmem:[%s70] sm:$0x10]
  %vm72 = vcmask 1044484
  %v73 = vsel %vm72, %v71, %v69
  %74 = vrot.lane.b32.xlu0 %v73, 96
  %v75 = vpop.permute.xlu0 %74
  %vm76 = vcmask 851712
  %77 = vst.msk [vmem:[%s1] sm:$0x1f] %vm76, %v75
  %s78 = scalar_lea.vmem %s0, 11
  %s79 = smov 3
  %v80 = vld [vmem:[%s78] ss:$16 sm:%s79]
  %s81 = scalar_lea.vmem %s0, 11
  %s82 = smov 12
  %v83 = vld [vmem:[%s81] ss:$16 sm:%s82]
  %vm84 = vcmask 1043458
  %v85 = vsel %vm84, %v83, %v80
  %s86 = scalar_lea.vmem %s0, 71
  %v87 = vld [vmem:[%s86] sm:$0x10]
  %vm88 = vcmask 1044484
  %v89 = vsel %vm88, %v87, %v85
  %90 = vrot.lane.b32.xlu0 %v89, 88
  %v91 = vpop.permute.xlu0 %90
  %vm92 = vcmask 786112
  %93 = vst.msk [vmem:[%s1] sm:$0x1f] %vm92, %v91
  %s94 = scalar_lea.vmem %s0, 10
  %s95 = smov 3
  %v96 = vld [vmem:[%s94] ss:$16 sm:%s95]
  %s97 = scalar_lea.vmem %s0, 10
  %s98 = smov 12
  %v99 = vld [vmem:[%s97] ss:$16 sm:%s98]
  %vm100 = vcmask 1043458
  %v101 = vsel %vm100, %v99, %v96
  %s102 = scalar_lea.vmem %s0, 70
  %v103 = vld [vmem:[%s102] sm:$0x10]
  %vm104 = vcmask 1044484
  %v105 = vsel %vm104, %v103, %v101
  %106 = vrot.lane.b32.xlu0 %v105, 80
  %v107 = vpop.permute.xlu0 %106
  %vm108 = vcmask 720512
  %109 = vst.msk [vmem:[%s1] sm:$0x1f] %vm108, %v107
  %s110 = scalar_lea.vmem %s0, 9
  %s111 = smov 3
  %v112 = vld [vmem:[%s110] ss:$16 sm:%s111]
  %s113 = scalar_lea.vmem %s0, 9
  %s114 = smov 12
  %v115 = vld [vmem:[%s113] ss:$16 sm:%s114]
  %vm116 = vcmask 1043458
  %v117 = vsel %vm116, %v115, %v112
  %s118 = scalar_lea.vmem %s0, 69
  %v119 = vld [vmem:[%s118] sm:$0x10]
  %vm120 = vcmask 1044484
  %v121 = vsel %vm120, %v119, %v117
  %122 = vrot.lane.b32.xlu0 %v121, 72
  %v123 = vpop.permute.xlu0 %122
  %vm124 = vcmask 654912
  %125 = vst.msk [vmem:[%s1] sm:$0x1f] %vm124, %v123
  %s126 = scalar_lea.vmem %s0, 8
  %s127 = smov 3
  %v128 = vld [vmem:[%s126] ss:$16 sm:%s127]
  %s129 = scalar_lea.vmem %s0, 8
  %s130 = smov 12
  %v131 = vld [vmem:[%s129] ss:$16 sm:%s130]
  %vm132 = vcmask 1043458
  %v133 = vsel %vm132, %v131, %v128
  %s134 = scalar_lea.vmem %s0, 68
  %v135 = vld [vmem:[%s134] sm:$0x10]
  %vm136 = vcmask 1044484
  %v137 = vsel %vm136, %v135, %v133
  %138 = vrot.lane.b32.xlu0 %v137, 64
  %v139 = vpop.permute.xlu0 %138
  %vm140 = vcmask 589312
  %141 = vst.msk [vmem:[%s1] sm:$0x1f] %vm140, %v139
  %s142 = scalar_lea.vmem %s0, 7
  %s143 = smov 3
  %v144 = vld [vmem:[%s142] ss:$16 sm:%s143]
  %s145 = scalar_lea.vmem %s0, 7
  %s146 = smov 12
  %v147 = vld [vmem:[%s145] ss:$16 sm:%s146]
  %vm148 = vcmask 1043458
  %v149 = vsel %vm148, %v147, %v144
  %s150 = scalar_lea.vmem %s0, 67
  %v151 = vld [vmem:[%s150] sm:$0x10]
  %vm152 = vcmask 1044484
  %v153 = vsel %vm152, %v151, %v149
  %154 = vrot.lane.b32.xlu0 %v153, 56
  %v155 = vpop.permute.xlu0 %154
  %vm156 = vcmask 523712
  %157 = vst.msk [vmem:[%s1] sm:$0x1f] %vm156, %v155
  %s158 = scalar_lea.vmem %s0, 6
  %s159 = smov 3
  %v160 = vld [vmem:[%s158] ss:$16 sm:%s159]
  %s161 = scalar_lea.vmem %s0, 6
  %s162 = smov 12
  %v163 = vld [vmem:[%s161] ss:$16 sm:%s162]
  %vm164 = vcmask 1043458
  %v165 = vsel %vm164, %v163, %v160
  %s166 = scalar_lea.vmem %s0, 66
  %v167 = vld [vmem:[%s166] sm:$0x10]
  %vm168 = vcmask 1044484
  %v169 = vsel %vm168, %v167, %v165
  %170 = vrot.lane.b32.xlu0 %v169, 48
  %v171 = vpop.permute.xlu0 %170
  %vm172 = vcmask 458112
  %173 = vst.msk [vmem:[%s1] sm:$0x1f] %vm172, %v171
  %s174 = scalar_lea.vmem %s0, 5
  %s175 = smov 3
  %v176 = vld [vmem:[%s174] ss:$16 sm:%s175]
  %s177 = scalar_lea.vmem %s0, 5
  %s178 = smov 12
  %v179 = vld [vmem:[%s177] ss:$16 sm:%s178]
  %vm180 = vcmask 1043458
  %v181 = vsel %vm180, %v179, %v176
  %s182 = scalar_lea.vmem %s0, 65
  %v183 = vld [vmem:[%s182] sm:$0x10]
  %vm184 = vcmask 1044484
  %v185 = vsel %vm184, %v183, %v181
  %186 = vrot.lane.b32.xlu0 %v185, 40
  %v187 = vpop.permute.xlu0 %186
  %vm188 = vcmask 392512
  %189 = vst.msk [vmem:[%s1] sm:$0x1f] %vm188, %v187
  %s190 = scalar_lea.vmem %s0, 4
  %s191 = smov 3
  %v192 = vld [vmem:[%s190] ss:$16 sm:%s191]
  %s193 = scalar_lea.vmem %s0, 4
  %s194 = smov 12
  %v195 = vld [vmem:[%s193] ss:$16 sm:%s194]
  %vm196 = vcmask 1043458
  %v197 = vsel %vm196, %v195, %v192
  %s198 = scalar_lea.vmem %s0, 64
  %v199 = vld [vmem:[%s198] sm:$0x10]
  %vm200 = vcmask 1044484
  %v201 = vsel %vm200, %v199, %v197
  %202 = vrot.lane.b32.xlu0 %v201, 32
  %v203 = vpop.permute.xlu0 %202
  %vm204 = vcmask 326912
  %205 = vst.msk [vmem:[%s1] sm:$0x1f] %vm204, %v203
  %s206 = scalar_lea.vmem %s0, 3
  %s207 = smov 3
  %v208 = vld [vmem:[%s206] ss:$16 sm:%s207]
  %s209 = scalar_lea.vmem %s0, 3
  %s210 = smov 12
  %v211 = vld [vmem:[%s209] ss:$16 sm:%s210]
  %vm212 = vcmask 1043458
  %v213 = vsel %vm212, %v211, %v208
  %s214 = scalar_lea.vmem %s0, 63
  %v215 = vld [vmem:[%s214] sm:$0x10]
  %vm216 = vcmask 1044484
  %v217 = vsel %vm216, %v215, %v213
  %218 = vrot.lane.b32.xlu0 %v217, 24
  %v219 = vpop.permute.xlu0 %218
  %vm220 = vcmask 261312
  %221 = vst.msk [vmem:[%s1] sm:$0x1f] %vm220, %v219
  %s222 = scalar_lea.vmem %s0, 2
  %s223 = smov 3
  %v224 = vld [vmem:[%s222] ss:$16 sm:%s223]
  %s225 = scalar_lea.vmem %s0, 2
  %s226 = smov 12
  %v227 = vld [vmem:[%s225] ss:$16 sm:%s226]
  %vm228 = vcmask 1043458
  %v229 = vsel %vm228, %v227, %v224
  %s230 = scalar_lea.vmem %s0, 62
  %v231 = vld [vmem:[%s230] sm:$0x10]
  %vm232 = vcmask 1044484
  %v233 = vsel %vm232, %v231, %v229
  %234 = vrot.lane.b32.xlu0 %v233, 16
  %v235 = vpop.permute.xlu0 %234
  %vm236 = vcmask 195712
  %237 = vst.msk [vmem:[%s1] sm:$0x1f] %vm236, %v235
  %s238 = scalar_lea.vmem %s0, 1
  %s239 = smov 3
  %v240 = vld [vmem:[%s238] ss:$16 sm:%s239]
  %s241 = scalar_lea.vmem %s0, 1
  %s242 = smov 12
  %v243 = vld [vmem:[%s241] ss:$16 sm:%s242]
  %vm244 = vcmask 1043458
  %v245 = vsel %vm244, %v243, %v240
  %s246 = scalar_lea.vmem %s0, 61
  %v247 = vld [vmem:[%s246] sm:$0x10]
  %vm248 = vcmask 1044484
  %v249 = vsel %vm248, %v247, %v245
  %250 = vrot.lane.b32.xlu0 %v249, 8
  %v251 = vpop.permute.xlu0 %250
  %vm252 = vcmask 130112
  %253 = vst.msk [vmem:[%s1] sm:$0x1f] %vm252, %v251

// kernel: residual_block_forward.1
$region0: #{residual_block_forward.1}
  #allocation0 [shape = 'u32[]', space=smem, size = 0x4, offset = 0x4, fixed_abs, tag = 'smem constant byte address 0x4 - core index']
  #allocation1 [shape = 'u32[144,128]{1,0:T(1,128)}', space=vmem, size = 0x12000, scoped, tag = 'internal scratch']
  %s0 = inlined_call_operand.vmem [shape: f32[32,64], index: 0, kind: input, shape index: {}]
  %s1 = inlined_call_operand.vmem [shape: f32[64,512], index: 1, kind: input, shape index: {}]
  %s2 = inlined_call_operand.vmem [shape: f32[128,384], index: 2, kind: input, shape index: {}]
  %s3 = inlined_call_operand.vmem [shape: f32[5,128], index: 3, kind: input, shape index: {}]
  %s4 = inlined_call_operand.vmem [shape: f32[32,128], index: 4, kind: output, shape index: {}]
  %s5 = sld [smem:[#allocation0]]
  $region26: #{residual_block_forward.1} parent=0
    _
  %s7 = ssub.s32 1, %s5
  %s8 = scalar_select 0, %s7, %s5
  // Predicated region
  $region2: #{residual_block_forward.1} parent=0 // pred_check
    _
  $region3: #{residual_block_forward.1} parent=0 // pred_check_branch
    %10 = sbr.rel (0) target = $region5
  $region4: #{residual_block_forward.1} parent=0 // pred_region
    _
  $region5: #{residual_block_forward.1} parent=0 // pred_fallthru
    _
  // Predicated region
  $region6: #{residual_block_forward.1} parent=0 // pred_check
    _
  $region7: #{residual_block_forward.1} parent=0 // pred_check_branch
    %12 = sbr.rel (0) target = $region9
  $region8: #{residual_block_forward.1} parent=0 // pred_region
    _
  $region9: #{residual_block_forward.1} parent=0 // pred_fallthru
    _
  // Predicated region
  $region10: #{residual_block_forward.1} parent=0 // pred_check
    _
  $region11: #{residual_block_forward.1} parent=0 // pred_check_branch
    %14 = sbr.rel (0) target = $region13
  $region12: #{residual_block_forward.1} parent=0 // pred_region
    _
  $region13: #{residual_block_forward.1} parent=0 // pred_fallthru
    _
  // Predicated region
  $region14: #{residual_block_forward.1} parent=0 // pred_check
    _
  $region15: #{residual_block_forward.1} parent=0 // pred_check_branch
    %16 = sbr.rel (0) target = $region17
  $region16: #{residual_block_forward.1} parent=0 // pred_region
    _
  $region17: #{residual_block_forward.1} parent=0 // pred_fallthru
    _
  %v17 = vlaneseq
  %v18 = vshrl.u32 %v17, 7
  %v19 = vadd.s32 %v18, 8
  %v20 = vadd.s32 %v18, 16
  %v21 = vadd.s32 %v18, 24
  %vm22 = vcmp.lt.s32.totalorder %v18, 0
  %v23 = vsub.s32 0, %v18
  %v24 = vsel %vm22, %v23, %v18
  %v25 = vshrl.u32 %v24, 4
  %v26 = vand.u32 %v24, 15
  %v27 = vsub.s32 0, %v26
  %v28 = vsel %vm22, %v27, %v26
  %vm29 = vcmp.lt.s32.totalorder %v19, 0
  %v30 = vsub.s32 0, %v19
  %v31 = vsel %vm29, %v30, %v19
  %v32 = vshrl.u32 %v31, 4
  %v33 = vand.u32 %v31, 15
  %v34 = vsub.s32 0, %v33
  %v35 = vsel %vm29, %v34, %v33
  %vm36 = vcmp.lt.s32.totalorder %v20, 0
  %v37 = vsub.s32 0, %v20
  %v38 = vsel %vm36, %v37, %v20
  %v39 = vshrl.u32 %v38, 4
  %v40 = vand.u32 %v38, 15
  %v41 = vsub.s32 0, %v40
  %v42 = vsel %vm36, %v41, %v40
  %vm43 = vcmp.lt.s32.totalorder %v21, 0
  %v44 = vsub.s32 0, %v21
  %v45 = vsel %vm43, %v44, %v21
  %v46 = vshrl.u32 %v45, 4
  %v47 = vand.u32 %v45, 15
  %v48 = vsub.s32 0, %v47
  %v49 = vsel %vm43, %v48, %v47
  %vm50 = vcmp.ne.s32.totalorder %v28, 0
  %vm51 = vcmp.ne.s32.totalorder %v35, 0
  %vm52 = vcmp.ne.s32.totalorder %v42, 0
  %vm53 = vcmp.ne.s32.totalorder %v49, 0
  %vm54 = vcmp.lt.s32.totalorder %v28, 0
  %vm55 = vcmp.lt.s32.totalorder %v35, 0
  %vm56 = vcmp.lt.s32.totalorder %v42, 0
  %vm57 = vcmp.lt.s32.totalorder %v49, 0
  %vm58 = vmand %vm54, %vm50
  %vm59 = vmand %vm55, %vm51
  %vm60 = vmand %vm56, %vm52
  %vm61 = vmand %vm57, %vm53
  %v62 = vadd.s32 %v28, 16
  %v63 = vadd.s32 %v35, 16
  %v64 = vadd.s32 %v42, 16
  %v65 = vadd.s32 %v49, 16
  %v66 = vsel %vm58, %v62, %v28
  %v67 = vsel %vm59, %v63, %v35
  %v68 = vsel %vm60, %v64, %v42
  %v69 = vsel %vm61, %v65, %v49
  %vm70 = vcmp.ne.s32.totalorder %v66, 0
  %vm71 = vcmp.ne.s32.totalorder %v67, 0
  %vm72 = vcmp.ne.s32.totalorder %v68, 0
  %vm73 = vcmp.ne.s32.totalorder %v69, 0
  %vm74 = vcmp.ne.s32.totalorder %v66, 15
  %vm75 = vcmp.ne.s32.totalorder %v67, 15
  %vm76 = vcmp.ne.s32.totalorder %v68, 15
  %vm77 = vcmp.ne.s32.totalorder %v69, 15
  %v78 = vld [vmem:[%s0] sm:$0xff]
  %v79 = vld [vmem:[%s0 + $0x8] sm:$0xff]
  %v80 = vld [vmem:[%s0 + $0x10] sm:$0xff]
  %v81 = vld [vmem:[%s0 + $0x18] sm:$0xff]
  %v82 = vld [vmem:[%s1] sm:$0xff]
  %v83 = vld [vmem:[%s1 + $0x8] sm:$0xff]
  %v84 = vld [vmem:[%s1 + $0x10] sm:$0xff]
  %v85 = vld [vmem:[%s1 + $0x18] sm:$0xff]
  %v86 = vld [vmem:[%s1 + $0x20] sm:$0xff]
  %v87 = vld [vmem:[%s1 + $0x28] sm:$0xff]
  %v88 = vld [vmem:[%s1 + $0x30] sm:$0xff]
  %v89 = vld [vmem:[%s1 + $0x38] sm:$0xff]
  %v90 = vld [vmem:[%s1 + $0x40] sm:$0xff]
  %v91 = vld [vmem:[%s1 + $0x48] sm:$0xff]
  %v92 = vld [vmem:[%s1 + $0x50] sm:$0xff]
  %v93 = vld [vmem:[%s1 + $0x58] sm:$0xff]
  %v94 = vld [vmem:[%s1 + $0x60] sm:$0xff]
  %v95 = vld [vmem:[%s1 + $0x68] sm:$0xff]
  %v96 = vld [vmem:[%s1 + $0x70] sm:$0xff]
  %v97 = vld [vmem:[%s1 + $0x78] sm:$0xff]
  %v98 = vld [vmem:[%s1 + $0x80] sm:$0xff]
  %v99 = vld [vmem:[%s1 + $0x88] sm:$0xff]
  %v100 = vld [vmem:[%s1 + $0x90] sm:$0xff]
  %v101 = vld [vmem:[%s1 + $0x98] sm:$0xff]
  %v102 = vld [vmem:[%s1 + $0xa0] sm:$0xff]
  %v103 = vld [vmem:[%s1 + $0xa8] sm:$0xff]
  %v104 = vld [vmem:[%s1 + $0xb0] sm:$0xff]
  %v105 = vld [vmem:[%s1 + $0xb8] sm:$0xff]
  %v106 = vld [vmem:[%s1 + $0xc0] sm:$0xff]
  %v107 = vld [vmem:[%s1 + $0xc8] sm:$0xff]
  %v108 = vld [vmem:[%s1 + $0xd0] sm:$0xff]
  %v109 = vld [vmem:[%s1 + $0xd8] sm:$0xff]
  %v110 = vld [vmem:[%s1 + $0xe0] sm:$0xff]
  %v111 = vld [vmem:[%s1 + $0xe8] sm:$0xff]
  %v112 = vld [vmem:[%s1 + $0xf0] sm:$0xff]
  %v113 = vld [vmem:[%s1 + $0xf8] sm:$0xff]
  %vm114 = vcmask 523264
  %v116 = vsel %vm114, %v78, 0
  %v119 = vsel %vm114, %v79, 0
  %v122 = vsel %vm114, %v80, 0
  %v125 = vsel %vm114, %v81, 0
  %127 = vmatprep.subr.mxu0 %v83
  %128 = vmatpush1.msra.mxu0 %v82
  %129 = vmatprep.subr.mxu0 %v87
  %130 = vmatpush1.msra.mxu0 %v86
  %131 = vmatprep.subr.mxu0 %v91
  %132 = vmatpush1.msra.mxu0 %v90
  %133 = vmatprep.subr.mxu0 %v95
  %134 = vmatpush1.msra.mxu0 %v94
  %135 = vmatprep.subr.mxu0 %v99
  %136 = vmatpush1.msra.mxu0 %v98
  %137 = vmatprep.subr.mxu0 %v103
  %138 = vmatpush1.msra.mxu0 %v102
  %139 = vmatprep.subr.mxu0 %v107
  %140 = vmatpush1.msra.mxu0 %v106
  %141 = vmatprep.subr.mxu0 %v111
  %142 = vmatpush1.msra.mxu0 %v110
  %143 = vmatprep.subr.mxu0 0.0
  %144 = vmatpush1.msra.mxu0 0.0
  %145 = vmatprep.subr.mxu0 0.0
  %146 = vmatpush1.msra.mxu0 0.0
  %147 = vmatprep.subr.mxu0 0.0
  %148 = vmatpush1.msra.mxu0 0.0
  %149 = vmatprep.subr.mxu0 0.0
  %150 = vmatpush1.msra.mxu0 0.0
  %151 = vmatprep.subr.mxu0 0.0
  %152 = vmatpush1.msra.mxu0 0.0
  %153 = vmatprep.subr.mxu0 0.0
  %154 = vmatpush1.msra.mxu0 0.0
  %155 = vmatprep.subr.mxu0 0.0
  %156 = vmatpush1.msra.mxu0 0.0
  %157 = vmatprep.subr.mxu0 0.0
  %158 = vmatpush1.msra.mxu0 0.0
  %159 = vmatprep.subr.mxu0 0.0
  %160 = vmatpush1.msra.mxu0 0.0
  %161 = vmatprep.subr.mxu0 0.0
  %162 = vmatpush1.msra.mxu0 0.0
  %163 = vmatprep.subr.mxu0 0.0
  %164 = vmatpush1.msra.mxu0 0.0
  %165 = vmatprep.subr.mxu0 0.0
  %166 = vmatpush1.msra.mxu0 0.0
  %167 = vmatprep.subr.mxu0 0.0
  %168 = vmatpush1.msra.mxu0 0.0
  %169 = vmatprep.subr.mxu0 0.0
  %170 = vmatpush1.msra.mxu0 0.0
  %171 = vmatprep.subr.mxu0 0.0
  %172 = vmatpush1.msra.mxu0 0.0
  %173 = vmatprep.subr.mxu0 0.0
  %174 = vmatpush1.msra.mxu0 0.0
  %175 = vmatprep.subr.mxu0 0.0
  %176 = vmatpush1.msra.mxu0 0.0
  %177 = vmatprep.subr.mxu0 0.0
  %178 = vmatpush1.msra.mxu0 0.0
  %179 = vmatprep.subr.mxu0 0.0
  %180 = vmatpush1.msra.mxu0 0.0
  %181 = vmatprep.subr.mxu0 0.0
  %182 = vmatpush1.msra.mxu0 0.0
  %183 = vmatprep.subr.mxu0 0.0
  %184 = vmatpush1.msra.mxu0 0.0
  %185 = vmatprep.subr.mxu0 0.0
  %186 = vmatpush1.msra.mxu0 0.0
  %187 = vmatprep.subr.mxu0 0.0
  %188 = vmatpush1.msra.mxu0 0.0
  %189 = vmatprep.subr.mxu0 0.0
  %190 = vmatpush1.msra.mxu0 0.0
  %191 = vmatprep.mubr.f32.mxu0 0.0
  %192 = vmatmul.mubr.f32.gmra.mrb[0].mxu0 %v116
  %v193 = vpop.f32.mrb[0].mxu0
  %v194 = vadd.f32 0.0, %v193
  %v195 = vpop.f32.mrb[0].mxu0
  %v196 = vadd.f32 0.0, %v195
  %197 = vmatprep.mubr.f32.mxu0 0.0
  %198 = vmatmul.mubr.f32.gmra.mrb[0].mxu0 %v119
  %v199 = vpop.f32.mrb[0].mxu0
  %v200 = vadd.f32 0.0, %v199
  %v201 = vpop.f32.mrb[0].mxu0
  %v202 = vadd.f32 0.0, %v201
  %203 = vmatprep.mubr.f32.mxu0 0.0
  %204 = vmatmul.mubr.f32.gmra.mrb[0].mxu0 %v122
  %v205 = vpop.f32.mrb[0].mxu0
  %v206 = vadd.f32 0.0, %v205
  %v207 = vpop.f32.mrb[0].mxu0
  %v208 = vadd.f32 0.0, %v207
  %209 = vmatprep.mubr.f32.mxu0 0.0
  %210 = vmatmul.mubr.f32.gmra.mrb[0].mxu0 %v125
  %v211 = vpop.f32.mrb[0].mxu0
  %v212 = vadd.f32 0.0, %v211
  %v213 = vpop.f32.mrb[0].mxu0
  %v214 = vadd.f32 0.0, %v213
  %215 = vdwg.mxu0
  %216 = vmatprep.subr.mxu0 %v85
  %217 = vmatpush1.msra.mxu0 %v84
  %218 = vmatprep.subr.mxu0 %v89
  %219 = vmatpush1.msra.mxu0 %v88
  %220 = vmatprep.subr.mxu0 %v93
  %221 = vmatpush1.msra.mxu0 %v92
  %222 = vmatprep.subr.mxu0 %v97
  %223 = vmatpush1.msra.mxu0 %v96
  %224 = vmatprep.subr.mxu0 %v101
  %225 = vmatpush1.msra.mxu0 %v100
  %226 = vmatprep.subr.mxu0 %v105
  %227 = vmatpush1.msra.mxu0 %v104
  %228 = vmatprep.subr.mxu0 %v109
  %229 = vmatpush1.msra.mxu0 %v108
  %230 = vmatprep.subr.mxu0 %v113
  %231 = vmatpush1.msra.mxu0 %v112
  %232 = vmatprep.subr.mxu0 0.0
  %233 = vmatpush1.msra.mxu0 0.0
  %234 = vmatprep.subr.mxu0 0.0
  %235 = vmatpush1.msra.mxu0 0.0
  %236 = vmatprep.subr.mxu0 0.0
  %237 = vmatpush1.msra.mxu0 0.0
  %238 = vmatprep.subr.mxu0 0.0
  %239 = vmatpush1.msra.mxu0 0.0
  %240 = vmatprep.subr.mxu0 0.0
  %241 = vmatpush1.msra.mxu0 0.0
  %242 = vmatprep.subr.mxu0 0.0
  %243 = vmatpush1.msra.mxu0 0.0
  %244 = vmatprep.subr.mxu0 0.0
  %245 = vmatpush1.msra.mxu0 0.0
  %246 = vmatprep.subr.mxu0 0.0
  %247 = vmatpush1.msra.mxu0 0.0
  %248 = vmatprep.subr.mxu0 0.0
  %249 = vmatpush1.msra.mxu0 0.0
  %250 = vmatprep.subr.mxu0 0.0
  %251 = vmatpush1.msra.mxu0 0.0
  %252 = vmatprep.subr.mxu0 0.0
  %253 = vmatpush1.msra.mxu0 0.0
  %254 = vmatprep.subr.mxu0 0.0
  %255 = vmatpush1.msra.mxu0 0.0
  %256 = vmatprep.subr.mxu0 0.0
  %257 = vmatpush1.msra.mxu0 0.0
  %258 = vmatprep.subr.mxu0 0.0
  %259 = vmatpush1.msra.mxu0 0.0
  %260 = vmatprep.subr.mxu0 0.0
  %261 = vmatpush1.msra.mxu0 0.0
  %262 = vmatprep.subr.mxu0 0.0
  %263 = vmatpush1.msra.mxu0 0.0
  %264 = vmatprep.subr.mxu0 0.0
  %265 = vmatpush1.msra.mxu0 0.0
  %266 = vmatprep.subr.mxu0 0.0
  %267 = vmatpush1.msra.mxu0 0.0
  %268 = vmatprep.subr.mxu0 0.0
  %269 = vmatpush1.msra.mxu0 0.0
  %270 = vmatprep.subr.mxu0 0.0
  %271 = vmatpush1.msra.mxu0 0.0
  %272 = vmatprep.subr.mxu0 0.0
  %273 = vmatpush1.msra.mxu0 0.0
  %274 = vmatprep.subr.mxu0 0.0
  %275 = vmatpush1.msra.mxu0 0.0
  %276 = vmatprep.subr.mxu0 0.0
  %277 = vmatpush1.msra.mxu0 0.0
  %278 = vmatprep.subr.mxu0 0.0
  %279 = vmatpush1.msra.mxu0 0.0
  %280 = vmatprep.mubr.f32.mxu0 0.0
  %281 = vmatmul.mubr.f32.gmra.mrb[0].mxu0 %v116
  %v282 = vpop.f32.mrb[0].mxu0
  %v283 = vadd.f32 0.0, %v282
  %v284 = vpop.f32.mrb[0].mxu0
  %v285 = vadd.f32 0.0, %v284
  %286 = vmatprep.mubr.f32.mxu0 0.0
  %287 = vmatmul.mubr.f32.gmra.mrb[0].mxu0 %v119
  %v288 = vpop.f32.mrb[0].mxu0
  %v289 = vadd.f32 0.0, %v288
  %v290 = vpop.f32.mrb[0].mxu0
  %v291 = vadd.f32 0.0, %v290
  %292 = vmatprep.mubr.f32.mxu0 0.0
  %293 = vmatmul.mubr.f32.gmra.mrb[0].mxu0 %v122
  %v294 = vpop.f32.mrb[0].mxu0
  %v295 = vadd.f32 0.0, %v294
  %v296 = vpop.f32.mrb[0].mxu0
  %v297 = vadd.f32 0.0, %v296
  %298 = vmatprep.mubr.f32.mxu0 0.0
  %299 = vmatmul.mubr.f32.gmra.mrb[0].mxu0 %v125
  %v300 = vpop.f32.mrb[0].mxu0
  %v301 = vadd.f32 0.0, %v300
  %v302 = vpop.f32.mrb[0].mxu0
  %v303 = vadd.f32 0.0, %v302
  %304 = vdwg.mxu0
  %vm309 = vcmask 1040384
  %v310 = vrot.slane %v194, 7
  %v311 = vrot.slane %v200, 7
  %v312 = vsel %vm309, %v310, %v311
  %v313 = vrot.slane %v206, 7
  %v314 = vsel %vm309, %v311, %v313
  %v315 = vrot.slane %v212, 7
  %v316 = vsel %vm309, %v313, %v315
  %v321 = vsel %vm309, 0.0, %v310
  %v322 = vsel %vm70, 1, 0
  %v323 = vsel %vm71, 1, 0
  %v324 = vsel %vm72, 1, 0
  %v325 = vsel %vm73, 1, 0
  %vm326 = vcmp.eq.s32.totalorder %v322, 1
  %vm327 = vcmp.eq.s32.totalorder %v323, 1
  %vm328 = vcmp.eq.s32.totalorder %v324, 1
  %vm329 = vcmp.eq.s32.totalorder %v325, 1
  %v330 = vsel %vm326, %v321, 0.0
  %v331 = vsel %vm327, %v312, 0.0
  %v332 = vsel %vm328, %v314, 0.0
  %v333 = vsel %vm329, %v316, 0.0
  %vm338 = vcmask 1046528
  %v339 = vrot.slane %v283, 1
  %v340 = vrot.slane %v289, 1
  %v341 = vsel %vm338, %v339, %v340
  %v342 = vrot.slane %v295, 1
  %v343 = vsel %vm338, %v340, %v342
  %v344 = vrot.slane %v301, 1
  %v345 = vsel %vm338, %v342, %v344
  %v350 = vsel %vm338, %v344, 0.0
  %v351 = vsel %vm74, 1, 0
  %v352 = vsel %vm75, 1, 0
  %v353 = vsel %vm76, 1, 0
  %v354 = vsel %vm77, 1, 0
  %vm355 = vcmp.eq.s32.totalorder %v351, 1
  %vm356 = vcmp.eq.s32.totalorder %v352, 1
  %vm357 = vcmp.eq.s32.totalorder %v353, 1
  %vm358 = vcmp.eq.s32.totalorder %v354, 1
  %v359 = vsel %vm355, %v341, 0.0
  %v360 = vsel %vm356, %v343, 0.0
  %v361 = vsel %vm357, %v345, 0.0
  %v362 = vsel %vm358, %v350, 0.0
  %v363 = vadd.f32 %v196, %v330
  %v364 = vadd.f32 %v202, %v331
  %v365 = vadd.f32 %v208, %v332
  %v366 = vadd.f32 %v214, %v333
  %v367 = vadd.f32 %v363, %v359
  %v368 = vadd.f32 %v364, %v360
  %v369 = vadd.f32 %v365, %v361
  %v370 = vadd.f32 %v366, %v362
  %v371 = vld [vmem:[%s3 + $0x4] sm:$0x1]
  %v372 = vlaneseq
  %v373 = vshrl.u32 %v372, 7
  %v374 = vsub.s32 0, %v373
  %v375 = vrot.slane %v371, %v374
  %v376 = vadd.f32 %v285, %v375
  %v377 = vadd.f32 %v291, %v375
  %v378 = vadd.f32 %v297, %v375
  %v379 = vadd.f32 %v303, %v375
  %v380 = vld [vmem:[%s3] sm:$0x1]
  %v381 = vld [vmem:[%s3 + $0x1] sm:$0x1]
  %v382 = vadd.f32 %v367, %v368
  %v383 = vadd.f32 %v382, %v369
  %v384 = vadd.f32 %v383, %v370
  %v385 = vrot.slane %v384, 4
  %v386 = vadd.f32 %v384, %v385
  %v387 = vrot.slane %v386, 2
  %v388 = vadd.f32 %v386, %v387
  %v389 = vrot.slane %v388, 1
  %v390 = vadd.f32 %v388, %v389
  %391 = vrot.lane.b32.xlu0 %v390, 8
  %v392 = vpop.permute.xlu0 %391
  %v393 = vadd.f32 %v390, %v392
  %394 = vrot.lane.b32.xlu0 %v393, 16
  %v395 = vpop.permute.xlu0 %394
  %v396 = vadd.f32 %v393, %v395
  %397 = vrot.lane.b32.xlu0 %v396, 32
  %v398 = vpop.permute.xlu0 %397
  %v399 = vadd.f32 %v396, %v398
  %400 = vrot.lane.b32.xlu0 %v399, 64
  %v401 = vpop.permute.xlu0 %400
  %v402 = vadd.f32 %v399, %v401
  %v403 = vmul.f32 %v367, %v367
  %v404 = vmul.f32 %v368, %v368
  %v405 = vmul.f32 %v369, %v369
  %v406 = vmul.f32 %v370, %v370
  %v407 = vadd.f32 %v403, %v404
  %v408 = vadd.f32 %v407, %v405
  %v409 = vadd.f32 %v408, %v406
  %v410 = vrot.slane %v409, 4
  %v411 = vadd.f32 %v409, %v410
  %v412 = vrot.slane %v411, 2
  %v413 = vadd.f32 %v411, %v412
  %v414 = vrot.slane %v413, 1
  %v415 = vadd.f32 %v413, %v414
  %416 = vrot.lane.b32.xlu0 %v415, 8
  %v417 = vpop.permute.xlu0 %416
  %v418 = vadd.f32 %v415, %v417
  %419 = vrot.lane.b32.xlu0 %v418, 16
  %v420 = vpop.permute.xlu0 %419
  %v421 = vadd.f32 %v418, %v420
  %422 = vrot.lane.b32.xlu0 %v421, 32
  %v423 = vpop.permute.xlu0 %422
  %v424 = vadd.f32 %v421, %v423
  %425 = vrot.lane.b32.xlu0 %v424, 64
  %v426 = vpop.permute.xlu0 %425
  %v427 = vadd.f32 %v424, %v426
  %v428 = vmul.f32 %v402, 0.001953125
  %v429 = vmul.f32 %v427, 0.001953125
  %v430 = vmul.f32 %v428, %v428
  %v431 = vsub.f32 %v429, %v430
  %v432 = vmax.f32 %v431, 0.0
  %v433 = vadd.f32 %v432, 1e-05
  %v434 = vrsqrt.pop %v433
  %v435 = vmul.f32 %v380, %v434
  %v436 = vmul.f32 %v428, %v435
  %v437 = vsub.f32 %v381, %v436
  %v438 = vlaneseq
  %v439 = vshrl.u32 %v438, 7
  %v440 = vsub.s32 0, %v439
  %v441 = vrot.slane %v435, %v440
  %v442 = vmul.f32 %v367, %v441
  %v443 = vmul.f32 %v368, %v441
  %v444 = vmul.f32 %v369, %v441
  %v445 = vmul.f32 %v370, %v441
  %v446 = vlaneseq
  %v447 = vshrl.u32 %v446, 7
  %v448 = vsub.s32 0, %v447
  %v449 = vrot.slane %v437, %v448
  %v450 = vadd.f32 %v442, %v449
  %v451 = vadd.f32 %v443, %v449
  %v452 = vadd.f32 %v444, %v449
  %v453 = vadd.f32 %v445, %v449
  %v454 = vmax.f32 %v450, 0.0
  %v455 = vmax.f32 %v451, 0.0
  %v456 = vmax.f32 %v452, 0.0
  %v457 = vmax.f32 %v453, 0.0
  %v458 = vld [vmem:[%s2] sm:$0xff]
  %v459 = vld [vmem:[%s2 + $0x8] sm:$0xff]
  %v460 = vld [vmem:[%s2 + $0x10] sm:$0xff]
  %v461 = vld [vmem:[%s2 + $0x18] sm:$0xff]
  %v462 = vld [vmem:[%s2 + $0x20] sm:$0xff]
  %v463 = vld [vmem:[%s2 + $0x28] sm:$0xff]
  %v464 = vld [vmem:[%s2 + $0x30] sm:$0xff]
  %v465 = vld [vmem:[%s2 + $0x38] sm:$0xff]
  %v466 = vld [vmem:[%s2 + $0x40] sm:$0xff]
  %v467 = vld [vmem:[%s2 + $0x48] sm:$0xff]
  %v468 = vld [vmem:[%s2 + $0x50] sm:$0xff]
  %v469 = vld [vmem:[%s2 + $0x58] sm:$0xff]
  %v470 = vld [vmem:[%s2 + $0x60] sm:$0xff]
  %v471 = vld [vmem:[%s2 + $0x68] sm:$0xff]
  %v472 = vld [vmem:[%s2 + $0x70] sm:$0xff]
  %v473 = vld [vmem:[%s2 + $0x78] sm:$0xff]
  %v474 = vld [vmem:[%s2 + $0x80] sm:$0xff]
  %v475 = vld [vmem:[%s2 + $0x88] sm:$0xff]
  %v476 = vld [vmem:[%s2 + $0x90] sm:$0xff]
  %v477 = vld [vmem:[%s2 + $0x98] sm:$0xff]
  %v478 = vld [vmem:[%s2 + $0xa0] sm:$0xff]
  %v479 = vld [vmem:[%s2 + $0xa8] sm:$0xff]
  %v480 = vld [vmem:[%s2 + $0xb0] sm:$0xff]
  %v481 = vld [vmem:[%s2 + $0xb8] sm:$0xff]
  %v482 = vld [vmem:[%s2 + $0xc0] sm:$0xff]
  %v483 = vld [vmem:[%s2 + $0xc8] sm:$0xff]
  %v484 = vld [vmem:[%s2 + $0xd0] sm:$0xff]
  %v485 = vld [vmem:[%s2 + $0xd8] sm:$0xff]
  %v486 = vld [vmem:[%s2 + $0xe0] sm:$0xff]
  %v487 = vld [vmem:[%s2 + $0xe8] sm:$0xff]
  %v488 = vld [vmem:[%s2 + $0xf0] sm:$0xff]
  %v489 = vld [vmem:[%s2 + $0xf8] sm:$0xff]
  %v490 = vld [vmem:[%s2 + $0x100] sm:$0xff]
  %v491 = vld [vmem:[%s2 + $0x108] sm:$0xff]
  %v492 = vld [vmem:[%s2 + $0x110] sm:$0xff]
  %v493 = vld [vmem:[%s2 + $0x118] sm:$0xff]
  %v494 = vld [vmem:[%s2 + $0x120] sm:$0xff]
  %v495 = vld [vmem:[%s2 + $0x128] sm:$0xff]
  %v496 = vld [vmem:[%s2 + $0x130] sm:$0xff]
  %v497 = vld [vmem:[%s2 + $0x138] sm:$0xff]
  %v498 = vld [vmem:[%s2 + $0x140] sm:$0xff]
  %v499 = vld [vmem:[%s2 + $0x148] sm:$0xff]
  %v500 = vld [vmem:[%s2 + $0x150] sm:$0xff]
  %v501 = vld [vmem:[%s2 + $0x158] sm:$0xff]
  %v502 = vld [vmem:[%s2 + $0x160] sm:$0xff]
  %v503 = vld [vmem:[%s2 + $0x168] sm:$0xff]
  %v504 = vld [vmem:[%s2 + $0x170] sm:$0xff]
  %v505 = vld [vmem:[%s2 + $0x178] sm:$0xff]
  %506 = vmatprep.subr.mxu0 %v459
  %507 = vmatpush1.msra.mxu0 %v458
  %508 = vmatprep.subr.mxu0 %v462
  %509 = vmatpush1.msra.mxu0 %v461
  %510 = vmatprep.subr.mxu0 %v465
  %511 = vmatpush1.msra.mxu0 %v464
  %512 = vmatprep.subr.mxu0 %v468
  %513 = vmatpush1.msra.mxu0 %v467
  %514 = vmatprep.subr.mxu0 %v471
  %515 = vmatpush1.msra.mxu0 %v470
  %516 = vmatprep.subr.mxu0 %v474
  %517 = vmatpush1.msra.mxu0 %v473
  %518 = vmatprep.subr.mxu0 %v477
  %519 = vmatpush1.msra.mxu0 %v476
  %520 = vmatprep.subr.mxu0 %v480
  %521 = vmatpush1.msra.mxu0 %v479
  %522 = vmatprep.subr.mxu0 %v483
  %523 = vmatpush1.msra.mxu0 %v482
  %524 = vmatprep.subr.mxu0 %v486
  %525 = vmatpush1.msra.mxu0 %v485
  %526 = vmatprep.subr.mxu0 %v489
  %527 = vmatpush1.msra.mxu0 %v488
  %528 = vmatprep.subr.mxu0 %v492
  %529 = vmatpush1.msra.mxu0 %v491
  %530 = vmatprep.subr.mxu0 %v495
  %531 = vmatpush1.msra.mxu0 %v494
  %532 = vmatprep.subr.mxu0 %v498
  %533 = vmatpush1.msra.mxu0 %v497
  %534 = vmatprep.subr.mxu0 %v501
  %535 = vmatpush1.msra.mxu0 %v500
  %536 = vmatprep.subr.mxu0 %v504
  %537 = vmatpush1.msra.mxu0 %v503
  %538 = vmatprep.subr.mxu0 0.0
  %539 = vmatpush1.msra.mxu0 0.0
  %540 = vmatprep.subr.mxu0 0.0
  %541 = vmatpush1.msra.mxu0 0.0
  %542 = vmatprep.subr.mxu0 0.0
  %543 = vmatpush1.msra.mxu0 0.0
  %544 = vmatprep.subr.mxu0 0.0
  %545 = vmatpush1.msra.mxu0 0.0
  %546 = vmatprep.subr.mxu0 0.0
  %547 = vmatpush1.msra.mxu0 0.0
  %548 = vmatprep.subr.mxu0 0.0
  %549 = vmatpush1.msra.mxu0 0.0
  %550 = vmatprep.subr.mxu0 0.0
  %551 = vmatpush1.msra.mxu0 0.0
  %552 = vmatprep.subr.mxu0 0.0
  %553 = vmatpush1.msra.mxu0 0.0
  %554 = vmatprep.subr.mxu0 0.0
  %555 = vmatpush1.msra.mxu0 0.0
  %556 = vmatprep.subr.mxu0 0.0
  %557 = vmatpush1.msra.mxu0 0.0
  %558 = vmatprep.subr.mxu0 0.0
  %559 = vmatpush1.msra.mxu0 0.0
  %560 = vmatprep.subr.mxu0 0.0
  %561 = vmatpush1.msra.mxu0 0.0
  %562 = vmatprep.subr.mxu0 0.0
  %563 = vmatpush1.msra.mxu0 0.0
  %564 = vmatprep.subr.mxu0 0.0
  %565 = vmatpush1.msra.mxu0 0.0
  %566 = vmatprep.subr.mxu0 0.0
  %567 = vmatpush1.msra.mxu0 0.0
  %568 = vmatprep.subr.mxu0 0.0
  %569 = vmatpush1.msra.mxu0 0.0
  %570 = vmatprep.mubr.f32.mxu0 0.0
  %571 = vmatmul.mubr.f32.gmra.mrb[0].mxu0 %v454
  %v572 = vpop.f32.mrb[0].mxu0
  %v573 = vadd.f32 0.0, %v572
  %v574 = vpop.f32.mrb[0].mxu0
  %v575 = vadd.f32 0.0, %v574
  %576 = vmatprep.mubr.f32.mxu0 0.0
  %577 = vmatmul.mubr.f32.gmra.mrb[0].mxu0 %v455
  %v578 = vpop.f32.mrb[0].mxu0
  %v579 = vadd.f32 0.0, %v578
  %v580 = vpop.f32.mrb[0].mxu0
  %v581 = vadd.f32 0.0, %v580
  %582 = vmatprep.mubr.f32.mxu0 0.0
  %583 = vmatmul.mubr.f32.gmra.mrb[0].mxu0 %v456
  %v584 = vpop.f32.mrb[0].mxu0
  %v585 = vadd.f32 0.0, %v584
  %v586 = vpop.f32.mrb[0].mxu0
  %v587 = vadd.f32 0.0, %v586
  %588 = vmatprep.mubr.f32.mxu0 0.0
  %589 = vmatmul.mubr.f32.gmra.mrb[0].mxu0 %v457
  %v590 = vpop.f32.mrb[0].mxu0
  %v591 = vadd.f32 0.0, %v590
  %v592 = vpop.f32.mrb[0].mxu0
  %v593 = vadd.f32 0.0, %v592
  %594 = vdwg.mxu0
  %595 = vmatprep.subr.mxu0 0.0
  %596 = vmatpush1.msra.mxu0 %v460
  %597 = vmatprep.subr.mxu0 0.0
  %598 = vmatpush1.msra.mxu0 %v463
  %599 = vmatprep.subr.mxu0 0.0
  %600 = vmatpush1.msra.mxu0 %v466
  %601 = vmatprep.subr.mxu0 0.0
  %602 = vmatpush1.msra.mxu0 %v469
  %603 = vmatprep.subr.mxu0 0.0
  %604 = vmatpush1.msra.mxu0 %v472
  %605 = vmatprep.subr.mxu0 0.0
  %606 = vmatpush1.msra.mxu0 %v475
  %607 = vmatprep.subr.mxu0 0.0
  %608 = vmatpush1.msra.mxu0 %v478
  %609 = vmatprep.subr.mxu0 0.0
  %610 = vmatpush1.msra.mxu0 %v481
  %611 = vmatprep.subr.mxu0 0.0
  %612 = vmatpush1.msra.mxu0 %v484
  %613 = vmatprep.subr.mxu0 0.0
  %614 = vmatpush1.msra.mxu0 %v487
  %615 = vmatprep.subr.mxu0 0.0
  %616 = vmatpush1.msra.mxu0 %v490
  %617 = vmatprep.subr.mxu0 0.0
  %618 = vmatpush1.msra.mxu0 %v493
  %619 = vmatprep.subr.mxu0 0.0
  %620 = vmatpush1.msra.mxu0 %v496
  %621 = vmatprep.subr.mxu0 0.0
  %622 = vmatpush1.msra.mxu0 %v499
  %623 = vmatprep.subr.mxu0 0.0
  %624 = vmatpush1.msra.mxu0 %v502
  %625 = vmatprep.subr.mxu0 0.0
  %626 = vmatpush1.msra.mxu0 %v505
  %627 = vmatprep.subr.mxu0 0.0
  %628 = vmatpush1.msra.mxu0 0.0
  %629 = vmatprep.subr.mxu0 0.0
  %630 = vmatpush1.msra.mxu0 0.0
  %631 = vmatprep.subr.mxu0 0.0
  %632 = vmatpush1.msra.mxu0 0.0
  %633 = vmatprep.subr.mxu0 0.0
  %634 = vmatpush1.msra.mxu0 0.0
  %635 = vmatprep.subr.mxu0 0.0
  %636 = vmatpush1.msra.mxu0 0.0
  %637 = vmatprep.subr.mxu0 0.0
  %638 = vmatpush1.msra.mxu0 0.0
  %639 = vmatprep.subr.mxu0 0.0
  %640 = vmatpush1.msra.mxu0 0.0
  %641 = vmatprep.subr.mxu0 0.0
  %642 = vmatpush1.msra.mxu0 0.0
  %643 = vmatprep.subr.mxu0 0.0
  %644 = vmatpush1.msra.mxu0 0.0
  %645 = vmatprep.subr.mxu0 0.0
  %646 = vmatpush1.msra.mxu0 0.0
  %647 = vmatprep.subr.mxu0 0.0
  %648 = vmatpush1.msra.mxu0 0.0
  %649 = vmatprep.subr.mxu0 0.0
  %650 = vmatpush1.msra.mxu0 0.0
  %651 = vmatprep.subr.mxu0 0.0
  %652 = vmatpush1.msra.mxu0 0.0
  %653 = vmatprep.subr.mxu0 0.0
  %654 = vmatpush1.msra.mxu0 0.0
  %655 = vmatprep.subr.mxu0 0.0
  %656 = vmatpush1.msra.mxu0 0.0
  %657 = vmatprep.subr.mxu0 0.0
  %658 = vmatpush1.msra.mxu0 0.0
  %659 = vmatprep.mubr.f32.mxu0 0.0
  %660 = vmatmul.mubr.f32.gmra.mrb[0].mxu0 %v454
  %v661 = vpop.f32.mrb[0].mxu0
  %v662 = vadd.f32 0.0, %v661
  %v663 = vpop.f32.mrb[0].mxu0
  %664 = vmatprep.mubr.f32.mxu0 0.0
  %665 = vmatmul.mubr.f32.gmra.mrb[0].mxu0 %v455
  %v666 = vpop.f32.mrb[0].mxu0
  %v667 = vadd.f32 0.0, %v666
  %v668 = vpop.f32.mrb[0].mxu0
  %669 = vmatprep.mubr.f32.mxu0 0.0
  %670 = vmatmul.mubr.f32.gmra.mrb[0].mxu0 %v456
  %v671 = vpop.f32.mrb[0].mxu0
  %v672 = vadd.f32 0.0, %v671
  %v673 = vpop.f32.mrb[0].mxu0
  %674 = vmatprep.mubr.f32.mxu0 0.0
  %675 = vmatmul.mubr.f32.gmra.mrb[0].mxu0 %v457
  %v676 = vpop.f32.mrb[0].mxu0
  %v677 = vadd.f32 0.0, %v676
  %v678 = vpop.f32.mrb[0].mxu0
  %679 = vdwg.mxu0
  %v684 = vrot.slane %v573, 7
  %v685 = vrot.slane %v579, 7
  %v686 = vsel %vm309, %v684, %v685
  %v687 = vrot.slane %v585, 7
  %v688 = vsel %vm309, %v685, %v687
  %v689 = vrot.slane %v591, 7
  %v690 = vsel %vm309, %v687, %v689
  %v695 = vsel %vm309, 0.0, %v684
  %v696 = vsel %vm326, %v695, 0.0
  %v697 = vsel %vm327, %v686, 0.0
  %v698 = vsel %vm328, %v688, 0.0
  %v699 = vsel %vm329, %v690, 0.0
  %v704 = vrot.slane %v662, 1
  %v705 = vrot.slane %v667, 1
  %v706 = vsel %vm338, %v704, %v705
  %v707 = vrot.slane %v672, 1
  %v708 = vsel %vm338, %v705, %v707
  %v709 = vrot.slane %v677, 1
  %v710 = vsel %vm338, %v707, %v709
  %v715 = vsel %vm338, %v709, 0.0
  %v716 = vsel %vm355, %v706, 0.0
  %v717 = vsel %vm356, %v708, 0.0
  %v718 = vsel %vm357, %v710, 0.0
  %v719 = vsel %vm358, %v715, 0.0
  %v720 = vadd.f32 %v575, %v696
  %v721 = vadd.f32 %v581, %v697
  %v722 = vadd.f32 %v587, %v698
  %v723 = vadd.f32 %v593, %v699
  %v724 = vadd.f32 %v720, %v716
  %v725 = vadd.f32 %v721, %v717
  %v726 = vadd.f32 %v722, %v718
  %v727 = vadd.f32 %v723, %v719
  %v728 = vld [vmem:[%s3 + $0x2] sm:$0x1]
  %v729 = vld [vmem:[%s3 + $0x3] sm:$0x1]
  %v730 = vadd.f32 %v724, %v725
  %v731 = vadd.f32 %v730, %v726
  %v732 = vadd.f32 %v731, %v727
  %v733 = vrot.slane %v732, 4
  %v734 = vadd.f32 %v732, %v733
  %v735 = vrot.slane %v734, 2
  %v736 = vadd.f32 %v734, %v735
  %v737 = vrot.slane %v736, 1
  %v738 = vadd.f32 %v736, %v737
  %739 = vrot.lane.b32.xlu0 %v738, 8
  %v740 = vpop.permute.xlu0 %739
  %v741 = vadd.f32 %v738, %v740
  %742 = vrot.lane.b32.xlu0 %v741, 16
  %v743 = vpop.permute.xlu0 %742
  %v744 = vadd.f32 %v741, %v743
  %745 = vrot.lane.b32.xlu0 %v744, 32
  %v746 = vpop.permute.xlu0 %745
  %v747 = vadd.f32 %v744, %v746
  %748 = vrot.lane.b32.xlu0 %v747, 64
  %v749 = vpop.permute.xlu0 %748
  %v750 = vadd.f32 %v747, %v749
  %v751 = vmul.f32 %v724, %v724
  %v752 = vmul.f32 %v725, %v725
  %v753 = vmul.f32 %v726, %v726
  %v754 = vmul.f32 %v727, %v727
  %v755 = vadd.f32 %v751, %v752
  %v756 = vadd.f32 %v755, %v753
  %v757 = vadd.f32 %v756, %v754
  %v758 = vrot.slane %v757, 4
  %v759 = vadd.f32 %v757, %v758
  %v760 = vrot.slane %v759, 2
  %v761 = vadd.f32 %v759, %v760
  %v762 = vrot.slane %v761, 1
  %v763 = vadd.f32 %v761, %v762
  %764 = vrot.lane.b32.xlu0 %v763, 8
  %v765 = vpop.permute.xlu0 %764
  %v766 = vadd.f32 %v763, %v765
  %767 = vrot.lane.b32.xlu0 %v766, 16
  %v768 = vpop.permute.xlu0 %767
  %v769 = vadd.f32 %v766, %v768
  %770 = vrot.lane.b32.xlu0 %v769, 32
  %v771 = vpop.permute.xlu0 %770
  %v772 = vadd.f32 %v769, %v771
  %773 = vrot.lane.b32.xlu0 %v772, 64
  %v774 = vpop.permute.xlu0 %773
  %v775 = vadd.f32 %v772, %v774
  %v776 = vmul.f32 %v750, 0.001953125
  %v777 = vmul.f32 %v775, 0.001953125
  %v778 = vmul.f32 %v776, %v776
  %v779 = vsub.f32 %v777, %v778
  %v780 = vmax.f32 %v779, 0.0
  %v781 = vadd.f32 %v780, 1e-05
  %v782 = vrsqrt.pop %v781
  %v783 = vmul.f32 %v728, %v782
  %v784 = vmul.f32 %v776, %v783
  %v785 = vsub.f32 %v729, %v784
  %v786 = vlaneseq
  %v787 = vshrl.u32 %v786, 7
  %v788 = vsub.s32 0, %v787
  %v789 = vrot.slane %v783, %v788
  %v790 = vmul.f32 %v724, %v789
  %v791 = vmul.f32 %v725, %v789
  %v792 = vmul.f32 %v726, %v789
  %v793 = vmul.f32 %v727, %v789
  %v794 = vlaneseq
  %v795 = vshrl.u32 %v794, 7
  %v796 = vsub.s32 0, %v795
  %v797 = vrot.slane %v785, %v796
  %v798 = vadd.f32 %v790, %v797
  %v799 = vadd.f32 %v791, %v797
  %v800 = vadd.f32 %v792, %v797
  %v801 = vadd.f32 %v793, %v797
  %v802 = vadd.f32 %v798, %v376
  %v803 = vadd.f32 %v799, %v377
  %v804 = vadd.f32 %v800, %v378
  %v805 = vadd.f32 %v801, %v379
  %v806 = vmax.f32 %v802, 0.0
  %v807 = vmax.f32 %v803, 0.0
  %v808 = vmax.f32 %v804, 0.0
  %v809 = vmax.f32 %v805, 0.0
  %810 = vst [vmem:[%s4] sm:$0xff] %v806
  %811 = vst [vmem:[%s4 + $0x8] sm:$0xff] %v807
  %812 = vst [vmem:[%s4 + $0x10] sm:$0xff] %v808
  %813 = vst [vmem:[%s4 + $0x18] sm:$0xff] %v809
  // Predicated region
  $region18: #{residual_block_forward.1} parent=0 // pred_check
    _
  $region19: #{residual_block_forward.1} parent=0 // pred_check_branch
    %815 = sbr.rel (0) target = $region21
  $region20: #{residual_block_forward.1} parent=0 // pred_region
    _
  $region21: #{residual_block_forward.1} parent=0 // pred_fallthru
    _
  // Predicated region
  $region22: #{residual_block_forward.1} parent=0 // pred_check
    _
  $region23: #{residual_block_forward.1} parent=0 // pred_check_branch
    %817 = sbr.rel (0) target = $region25
  $region24: #{residual_block_forward.1} parent=0 // pred_region
    _
  $region25: #{residual_block_forward.1} parent=0 // pred_fallthru
    _

</llo_original>
